<compile_context>
chip_gen: v5e
topology: v5e:2x2
jax: 0.10.0
libtpu: 0.0.40
codegen_flags: <defaults>
</compile_context>

<pallas_src>
import functools

import jax
import jax.numpy as jnp
from jax import lax
from jax.experimental import pallas as pl
from jax.experimental.pallas import tpu as pltpu


_LN_EPS = 1e-5


def _layernorm(x, gamma, beta):
    """PyTorch-style LayerNorm over the last dim (biased variance), f32."""
    mu = jnp.mean(x, axis=-1, keepdims=True)
    xc = x - mu
    var = jnp.mean(xc * xc, axis=-1, keepdims=True)
    return xc * lax.rsqrt(var + _LN_EPS) * gamma + beta


def _vmem_limit(weight_bytes, act_bytes):
    """Shape-derived scoped-VMEM limit (headroom for double-buffering and
    intermediates), clamped to a range that is safe across v5e/v6e/v7x."""
    need = int(weight_bytes + act_bytes)
    return int(min(max(4 * need, 32 * 1024 * 1024), 96 * 1024 * 1024))


# ------------------------------------------------------------------ kernel A
# [pre-norm]  out = x + Wo(attn(LN1(x))) ;  [post-norm]  out = LN1(x + Wo(attn(x)))
def _attn_block_kernel(x_ref, g_ref, b_ref, wqkv_ref, bqkv_ref, wo_ref, bo_ref,
                       o_ref, cat_ref, *, num_heads, dim_keys, pre_norm):
    x = x_ref[0].astype(jnp.float32)                       # (S, D)
    H, dk = num_heads, dim_keys
    dv = dk

    attn_in = _layernorm(x, g_ref[...], b_ref[...]) if pre_norm else x

    # Fused QKV projection, one MXU matmul (bf16 operands, f32 accumulation).
    # Column layout: [Q_0..Q_{H-1} | K_0..K_{H-1} | V_0..V_{H-1}]; the
    # 1/sqrt(dk) scale is already folded into the Q columns by the wrapper.
    qkv = jnp.dot(attn_in.astype(jnp.bfloat16), wqkv_ref[...],
                  preferred_element_type=jnp.float32) + bqkv_ref[...]

    # Per-head softmax attention; each head's output is written to a
    # lane-dense (S, H*dv) VMEM concat buffer so the output projection below
    # is a single K=H*dv MXU matmul instead of H small-K matmuls.
    for h in range(H):
        q = qkv[:, h * dk:(h + 1) * dk]                    # (S, dk), pre-scaled
        k = qkv[:, (H + h) * dk:(H + h + 1) * dk]          # (S, dk)
        v = qkv[:, (2 * H + h) * dv:(2 * H + h + 1) * dv]  # (S, dv)
        # Contract over dk directly (no explicit transpose through the XLU).
        s = lax.dot_general(q.astype(jnp.bfloat16), k.astype(jnp.bfloat16),
                            (((1,), (1,)), ((), ())),
                            preferred_element_type=jnp.float32)
        s = s - jnp.max(s, axis=-1, keepdims=True)
        p = jnp.exp(s)
        p = p / jnp.sum(p, axis=-1, keepdims=True)         # exact divide
        cat_ref[:, h * dv:(h + 1) * dv] = jnp.dot(
            p.astype(jnp.bfloat16), v.astype(jnp.bfloat16),
            preferred_element_type=jnp.float32)

    # Single output projection over all heads (K = H*dv).
    attn = jnp.dot(cat_ref[...].astype(jnp.bfloat16), wo_ref[...],
                   preferred_element_type=jnp.float32) + bo_ref[...]

    if pre_norm:
        out = x + attn
    else:
        out = _layernorm(x + attn, g_ref[...], b_ref[...])
    o_ref[0] = out.astype(o_ref.dtype)


def attention_block(x, gamma, beta, wqkv, bqkv, wo, bo, *, num_heads, pre_norm):
    B, S, D = x.shape
    dk = D // num_heads
    dv = dk
    qkv_out = wqkv.shape[-1]                               # 3*H*dk
    hdv = num_heads * dv

    # Fold the 1/sqrt(dk) attention scale into the Q projection (weight+bias),
    # then cast the matmul weights to bf16 (halves DMA bytes + VMEM footprint).
    scale = 1.0 / (float(dk) ** 0.5)
    q_scale = jnp.concatenate(
        [jnp.full((num_heads * dk,), scale, jnp.float32),
         jnp.ones((2 * num_heads * dk,), jnp.float32)])
    wqkv_bf = (wqkv * q_scale).astype(jnp.bfloat16)
    bqkv_s = (bqkv * q_scale).astype(jnp.float32)
    wo_bf = wo.astype(jnp.bfloat16)

    kern = functools.partial(_attn_block_kernel, num_heads=num_heads,
                             dim_keys=dk, pre_norm=pre_norm)

    flops = int(B * (2 * S * D * qkv_out                   # fused QKV
                     + num_heads * (4 * S * S * dk)        # scores + P@V
                     + 2 * S * hdv * D))                   # output projection
    transc = int(B * (num_heads * S * S + S))              # exp + rsqrt
    weight_bytes = 2 * (D * qkv_out + hdv * D) + 4 * (qkv_out + D + 2 * D)
    act_bytes = 4 * (2 * S * D + S * qkv_out + S * S + S * hdv)
    bytes_acc = int(4 * 2 * B * S * D + weight_bytes)

    return pl.pallas_call(
        kern,
        out_shape=jax.ShapeDtypeStruct((B, S, D), x.dtype),
        grid=(B,),
        in_specs=[
            pl.BlockSpec((1, S, D), lambda b: (b, 0, 0)),
            pl.BlockSpec((1, D), lambda b: (0, 0)),
            pl.BlockSpec((1, D), lambda b: (0, 0)),
            pl.BlockSpec((D, qkv_out), lambda b: (0, 0)),
            pl.BlockSpec((1, qkv_out), lambda b: (0, 0)),
            pl.BlockSpec((hdv, D), lambda b: (0, 0)),
            pl.BlockSpec((1, D), lambda b: (0, 0)),
        ],
        out_specs=pl.BlockSpec((1, S, D), lambda b: (b, 0, 0)),
        scratch_shapes=[pltpu.VMEM((S, hdv), jnp.float32)],
        compiler_params=pltpu.CompilerParams(
            dimension_semantics=("parallel",),
            vmem_limit_bytes=_vmem_limit(weight_bytes, act_bytes)),
        cost_estimate=pl.CostEstimate(flops=flops, transcendentals=transc,
                                      bytes_accessed=bytes_acc),
    )(x, gamma, beta, wqkv_bf, bqkv_s, wo_bf, bo)


# ------------------------------------------------------------------ kernel B
# [pre-norm]  out = x + FFN(LN2(x)) ;  [post-norm]  out = LN2(x + FFN(x))
# Operates on the flattened (B*S, D) residual stream in row tiles.
def _ffn_block_kernel(x_ref, g_ref, b_ref, w1_ref, b1_ref, w2_ref, b2_ref,
                      o_ref, *, pre_norm):
    x = x_ref[...].astype(jnp.float32)                     # (TM, D)
    ff_in = _layernorm(x, g_ref[...], b_ref[...]) if pre_norm else x
    h = jnp.dot(ff_in.astype(jnp.bfloat16), w1_ref[...],
                preferred_element_type=jnp.float32) + b1_ref[...]
    h = jnp.maximum(h, 0.0)                                # ReLU
    ffn = jnp.dot(h.astype(jnp.bfloat16), w2_ref[...],
                  preferred_element_type=jnp.float32) + b2_ref[...]
    if pre_norm:
        out = x + ffn
    else:
        out = _layernorm(x + ffn, g_ref[...], b_ref[...])
    o_ref[...] = out.astype(o_ref.dtype)


def ffn_block(x, gamma, beta, w1, b1, w2, b2, *, pre_norm):
    B, S, D = x.shape
    d_ff = w1.shape[-1]
    BS = B * S
    # Row-tile size: fill the MXU M dimension / amortize per-step overhead.
    TM = 256 if BS % 256 == 0 else (128 if BS % 128 == 0 else BS)

    x2 = x.reshape(BS, D)
    w1_bf = w1.astype(jnp.bfloat16)
    w2_bf = w2.astype(jnp.bfloat16)

    kern = functools.partial(_ffn_block_kernel, pre_norm=pre_norm)

    flops = int(BS * (2 * D * d_ff + 2 * d_ff * D))
    transc = int(BS)                                       # rsqrt
    weight_bytes = 2 * (2 * D * d_ff) + 4 * (d_ff + 3 * D)
    act_bytes = 4 * (2 * TM * D + TM * d_ff)
    bytes_acc = int(4 * 2 * BS * D + weight_bytes)

    out = pl.pallas_call(
        kern,
        out_shape=jax.ShapeDtypeStruct((BS, D), x.dtype),
        grid=(BS // TM,),
        in_specs=[
            pl.BlockSpec((TM, D), lambda i: (i, 0)),
            pl.BlockSpec((1, D), lambda i: (0, 0)),
            pl.BlockSpec((1, D), lambda i: (0, 0)),
            pl.BlockSpec((D, d_ff), lambda i: (0, 0)),
            pl.BlockSpec((1, d_ff), lambda i: (0, 0)),
            pl.BlockSpec((d_ff, D), lambda i: (0, 0)),
            pl.BlockSpec((1, D), lambda i: (0, 0)),
        ],
        out_specs=pl.BlockSpec((TM, D), lambda i: (i, 0)),
        compiler_params=pltpu.CompilerParams(
            dimension_semantics=("parallel",),
            vmem_limit_bytes=_vmem_limit(weight_bytes, act_bytes)),
        cost_estimate=pl.CostEstimate(flops=flops, transcendentals=transc,
                                      bytes_accessed=bytes_acc),
    )(x2, gamma, beta, w1_bf, b1, w2_bf, b2)
    return out.reshape(B, S, D)


# ---------------------------------------------------------------- EncoderBlock
def init_encoder_block_params(key, num_heads, d_model, d_ff):
    dk = d_model // num_heads
    dv = d_model // num_heads
    ks = jax.random.split(key, 10)
    s = 0.1
    # per-head Q/K/V projections, stored (in, out)
    wq = jax.random.normal(ks[0], (num_heads, d_model, dk), jnp.float32) * s
    bq = jax.random.normal(ks[1], (num_heads, dk), jnp.float32) * s
    wk = jax.random.normal(ks[2], (num_heads, d_model, dk), jnp.float32) * s
    bk = jax.random.normal(ks[3], (num_heads, dk), jnp.float32) * s
    wv = jax.random.normal(ks[4], (num_heads, d_model, dv), jnp.float32) * s
    bv = jax.random.normal(ks[5], (num_heads, dv), jnp.float32) * s
    # fused QKV layout: [Q_0..Q_{H-1} | K_0..K_{H-1} | V_0..V_{H-1}]
    wqkv = jnp.concatenate(
        [jnp.concatenate([wq[h] for h in range(num_heads)], axis=-1),
         jnp.concatenate([wk[h] for h in range(num_heads)], axis=-1),
         jnp.concatenate([wv[h] for h in range(num_heads)], axis=-1)], axis=-1)
    bqkv = jnp.concatenate(
        [bq.reshape(1, num_heads * dk),
         bk.reshape(1, num_heads * dk),
         bv.reshape(1, num_heads * dv)], axis=-1)
    p = {
        "wqkv": wqkv,                                       # (D, 3*H*dk)
        "bqkv": bqkv,                                       # (1, 3*H*dk)
        # MHA output projection (num_heads*dv -> d_model)
        "wo": jax.random.normal(ks[6], (num_heads * dv, d_model), jnp.float32) * s,
        "bo": jax.random.normal(ks[7], (1, d_model), jnp.float32) * s,
        # LayerNorms (PyTorch default init: weight=1, bias=0)
        "ln1_g": jnp.ones((1, d_model), jnp.float32),
        "ln1_b": jnp.zeros((1, d_model), jnp.float32),
        "ln2_g": jnp.ones((1, d_model), jnp.float32),
        "ln2_b": jnp.zeros((1, d_model), jnp.float32),
        # FeedForward
        "w1": jax.random.normal(ks[8], (d_model, d_ff), jnp.float32) * s,
        "b1": jnp.zeros((1, d_ff), jnp.float32),
        "w2": jax.random.normal(ks[9], (d_ff, d_model), jnp.float32) * s,
        "b2": jnp.zeros((1, d_model), jnp.float32),
    }
    return p


def encoder_block_forward(x, p, num_heads, pre_norm: bool):
    x = attention_block(x, p["ln1_g"], p["ln1_b"], p["wqkv"], p["bqkv"],
                        p["wo"], p["bo"], num_heads=num_heads, pre_norm=pre_norm)
    x = ffn_block(x, p["ln2_g"], p["ln2_b"], p["w1"], p["b1"], p["w2"], p["b2"],
                  pre_norm=pre_norm)
    return x


# ---------------------------------------------------------------- pure-JAX ref
def _ref_encoder_block(x, p, num_heads, pre_norm):
    def ln(v, g, b):
        mu = v.mean(-1, keepdims=True)
        var = ((v - mu) ** 2).mean(-1, keepdims=True)
        return (v - mu) / jnp.sqrt(var + _LN_EPS) * g + b

    def mha(v):
        B, S, D = v.shape
        dk = D // num_heads
        qkv = v @ p["wqkv"] + p["bqkv"]
        outs = []
        for h in range(num_heads):
            q = qkv[..., h * dk:(h + 1) * dk]
            k = qkv[..., (num_heads + h) * dk:(num_heads + h + 1) * dk]
            vv = qkv[..., (2 * num_heads + h) * dk:(2 * num_heads + h + 1) * dk]
            s = jnp.einsum("bqd,bkd->bqk", q, k) / jnp.sqrt(float(dk))
            outs.append(jnp.einsum("bqk,bkd->bqd", jax.nn.softmax(s, -1), vv))
        return jnp.concatenate(outs, axis=-1) @ p["wo"] + p["bo"]

    def ffn(v):
        return jnp.maximum(v @ p["w1"] + p["b1"], 0.0) @ p["w2"] + p["b2"]

    if pre_norm:
        xn = ln(x, p["ln1_g"], p["ln1_b"])
        x = x + mha(xn)
        x = x + ffn(ln(x, p["ln2_g"], p["ln2_b"]))
    else:
        x = ln(x + mha(x), p["ln1_g"], p["ln1_b"])
        x = ln(x + ffn(x), p["ln2_g"], p["ln2_b"])
    return x


if __name__ == "__main__":
    B, S, D = 2, 8, 32          # batch, context_size, d_model
    num_heads, d_ff = 4, 64

    key = jax.random.PRNGKey(0)
    kx, kp = jax.random.split(key)
    x = jax.random.normal(kx, (B, S, D), jnp.float32)
    params = init_encoder_block_params(kp, num_heads, D, d_ff)

    out_pre = encoder_block_forward(x, params, num_heads, pre_norm=True)
    out_post = encoder_block_forward(x, params, num_heads, pre_norm=False)
    jax.block_until_ready(out_pre)
    jax.block_until_ready(out_post)

    assert out_pre.shape == (B, S, D) and out_post.shape == (B, S, D)
    assert jnp.all(jnp.isfinite(out_pre)) and jnp.all(jnp.isfinite(out_post))

    # Tolerance accounts for bf16 MXU operands (f32 reference).
    ref_pre = _ref_encoder_block(x, params, num_heads, pre_norm=True)
    ref_post = _ref_encoder_block(x, params, num_heads, pre_norm=False)
    assert jnp.allclose(out_pre, ref_pre, rtol=2e-2, atol=2e-2)
    assert jnp.allclose(out_post, ref_post, rtol=2e-2, atol=2e-2)

    print("KERNEL_OK")
</pallas_src>

<mosaic_0001>
module attributes {stable_mosaic.version = 11 : i64} {
  func.func @_attn_block_kernel(%arg0: i32, %arg1: memref<1x8x32xf32, #tpu.memory_space<vmem>>, %arg2: memref<1x32xf32, #tpu.memory_space<vmem>>, %arg3: memref<1x32xf32, #tpu.memory_space<vmem>>, %arg4: memref<32x96xbf16, #tpu.memory_space<vmem>>, %arg5: memref<1x96xf32, #tpu.memory_space<vmem>>, %arg6: memref<32x32xbf16, #tpu.memory_space<vmem>>, %arg7: memref<1x32xf32, #tpu.memory_space<vmem>>, %arg8: memref<1x8x32xf32, #tpu.memory_space<vmem>>, %arg9: memref<8x32xf32, #tpu.memory_space<vmem>>) attributes {dimension_semantics = [#tpu.dimension_semantics<parallel>], iteration_bounds = array<i64: 2>, scalar_prefetch = 0 : i64, scratch_operands = 1 : i64, tpu.core_type = #tpu.core_type<tc>, window_params = [{transform_indices = @transform_0, window_bounds = array<i64: 1, 8, 32>}, {pipeline_mode = #tpu.pipeline_mode<synchronous>, transform_indices = @transform_1, window_bounds = array<i64: 1, 32>}, {pipeline_mode = #tpu.pipeline_mode<synchronous>, transform_indices = @transform_2, window_bounds = array<i64: 1, 32>}, {pipeline_mode = #tpu.pipeline_mode<synchronous>, transform_indices = @transform_3, window_bounds = array<i64: 32, 96>}, {pipeline_mode = #tpu.pipeline_mode<synchronous>, transform_indices = @transform_4, window_bounds = array<i64: 1, 96>}, {pipeline_mode = #tpu.pipeline_mode<synchronous>, transform_indices = @transform_5, window_bounds = array<i64: 32, 32>}, {pipeline_mode = #tpu.pipeline_mode<synchronous>, transform_indices = @transform_6, window_bounds = array<i64: 1, 32>}, {transform_indices = @transform_7, window_bounds = array<i64: 1, 8, 32>}]} {
    %c0 = arith.constant 0 : index
    %c0_0 = arith.constant 0 : index
    %c0_1 = arith.constant 0 : index
    %0 = vector.load %arg1[%c0, %c0_0, %c0_1] : memref<1x8x32xf32, #tpu.memory_space<vmem>>, vector<1x8x32xf32>
    %1 = vector.shape_cast %0 : vector<1x8x32xf32> to vector<8x32xf32>
    %c0_2 = arith.constant 0 : index
    %c0_3 = arith.constant 0 : index
    %2 = vector.load %arg2[%c0_2, %c0_3] : memref<1x32xf32, #tpu.memory_space<vmem>>, vector<1x32xf32>
    %c0_4 = arith.constant 0 : index
    %c0_5 = arith.constant 0 : index
    %3 = vector.load %arg3[%c0_4, %c0_5] : memref<1x32xf32, #tpu.memory_space<vmem>>, vector<1x32xf32>
    %cst = arith.constant dense<0.000000e+00> : vector<8xf32>
    %4 = vector.multi_reduction <add>, %1, %cst [1] : vector<8x32xf32> to vector<8xf32>
    %5 = vector.shape_cast %4 : vector<8xf32> to vector<8x1xf32>
    %cst_6 = arith.constant 3.200000e+01 : f32
    %6 = vector.broadcast %cst_6 : f32 to vector<8x1xf32>
    %7 = arith.divf %5, %6 : vector<8x1xf32>
    %8 = vector.broadcast %7 : vector<8x1xf32> to vector<8x32xf32>
    %9 = arith.subf %1, %8 : vector<8x32xf32>
    %10 = arith.mulf %9, %9 : vector<8x32xf32>
    %cst_7 = arith.constant dense<0.000000e+00> : vector<8xf32>
    %11 = vector.multi_reduction <add>, %10, %cst_7 [1] : vector<8x32xf32> to vector<8xf32>
    %12 = vector.shape_cast %11 : vector<8xf32> to vector<8x1xf32>
    %cst_8 = arith.constant 3.200000e+01 : f32
    %13 = vector.broadcast %cst_8 : f32 to vector<8x1xf32>
    %14 = arith.divf %12, %13 : vector<8x1xf32>
    %cst_9 = arith.constant 9.99999974E-6 : f32
    %15 = vector.broadcast %cst_9 : f32 to vector<8x1xf32>
    %16 = arith.addf %14, %15 : vector<8x1xf32>
    %17 = math.rsqrt %16 : vector<8x1xf32>
    %18 = vector.broadcast %17 : vector<8x1xf32> to vector<8x32xf32>
    %19 = arith.mulf %9, %18 : vector<8x32xf32>
    %20 = vector.broadcast %2 : vector<1x32xf32> to vector<8x32xf32>
    %21 = arith.mulf %19, %20 : vector<8x32xf32>
    %22 = vector.broadcast %3 : vector<1x32xf32> to vector<8x32xf32>
    %23 = arith.addf %21, %22 : vector<8x32xf32>
    %24 = arith.truncf %23 : vector<8x32xf32> to vector<8x32xbf16>
    %c0_10 = arith.constant 0 : index
    %c0_11 = arith.constant 0 : index
    %25 = vector.load %arg4[%c0_10, %c0_11] : memref<32x96xbf16, #tpu.memory_space<vmem>>, vector<32x96xbf16>
    %cst_12 = arith.constant dense<0.000000e+00> : vector<8x96xf32>
    %26 = tpu.matmul %24, %25, %cst_12 {dimension_numbers = #tpu.dot_dimension_numbers<[1], [0], [0], [1], [0, 0, 1, 1], [], []>} : vector<8x32xbf16>, vector<32x96xbf16>, vector<8x96xf32> -> vector<8x96xf32>
    %c0_13 = arith.constant 0 : index
    %c0_14 = arith.constant 0 : index
    %27 = vector.load %arg5[%c0_13, %c0_14] : memref<1x96xf32, #tpu.memory_space<vmem>>, vector<1x96xf32>
    %28 = vector.broadcast %27 : vector<1x96xf32> to vector<8x96xf32>
    %29 = arith.addf %26, %28 : vector<8x96xf32>
    %30 = vector.extract_strided_slice %29 {offsets = [0, 0], sizes = [8, 8], strides = [1, 1]} : vector<8x96xf32> to vector<8x8xf32>
    %31 = vector.extract_strided_slice %29 {offsets = [0, 32], sizes = [8, 8], strides = [1, 1]} : vector<8x96xf32> to vector<8x8xf32>
    %32 = vector.extract_strided_slice %29 {offsets = [0, 64], sizes = [8, 8], strides = [1, 1]} : vector<8x96xf32> to vector<8x8xf32>
    %33 = arith.truncf %30 : vector<8x8xf32> to vector<8x8xbf16>
    %34 = arith.truncf %31 : vector<8x8xf32> to vector<8x8xbf16>
    %cst_15 = arith.constant dense<0.000000e+00> : vector<8x8xf32>
    %35 = tpu.matmul %33, %34, %cst_15 {dimension_numbers = #tpu.dot_dimension_numbers<[1], [1], [0], [0], [0, 0, 1, 0], [], []>} : vector<8x8xbf16>, vector<8x8xbf16>, vector<8x8xf32> -> vector<8x8xf32>
    %cst_16 = arith.constant dense<0xFF800000> : vector<8xf32>
    %36 = vector.multi_reduction <maximumf>, %35, %cst_16 [1] : vector<8x8xf32> to vector<8xf32>
    %37 = vector.shape_cast %36 : vector<8xf32> to vector<8x1xf32>
    %38 = vector.broadcast %37 : vector<8x1xf32> to vector<8x8xf32>
    %39 = arith.subf %35, %38 : vector<8x8xf32>
    %40 = math.exp %39 : vector<8x8xf32>
    %cst_17 = arith.constant dense<0.000000e+00> : vector<8xf32>
    %41 = vector.multi_reduction <add>, %40, %cst_17 [1] : vector<8x8xf32> to vector<8xf32>
    %42 = vector.shape_cast %41 : vector<8xf32> to vector<8x1xf32>
    %43 = vector.broadcast %42 : vector<8x1xf32> to vector<8x8xf32>
    %44 = arith.divf %40, %43 : vector<8x8xf32>
    %45 = arith.truncf %44 : vector<8x8xf32> to vector<8x8xbf16>
    %46 = arith.truncf %32 : vector<8x8xf32> to vector<8x8xbf16>
    %cst_18 = arith.constant dense<0.000000e+00> : vector<8x8xf32>
    %47 = tpu.matmul %45, %46, %cst_18 {dimension_numbers = #tpu.dot_dimension_numbers<[1], [0], [0], [1], [0, 0, 1, 1], [], []>} : vector<8x8xbf16>, vector<8x8xbf16>, vector<8x8xf32> -> vector<8x8xf32>
    %c0_19 = arith.constant 0 : index
    %c0_20 = arith.constant 0 : index
    %48 = vector.load %arg9[%c0_19, %c0_20] : memref<8x32xf32, #tpu.memory_space<vmem>>, vector<8x8xf32>
    tpu.vector_store %arg9[%c0_19, %c0_20], %47 {strides = array<i32>} : memref<8x32xf32, #tpu.memory_space<vmem>>, vector<8x8xf32>,
    %49 = vector.extract_strided_slice %29 {offsets = [0, 8], sizes = [8, 8], strides = [1, 1]} : vector<8x96xf32> to vector<8x8xf32>
    %50 = vector.extract_strided_slice %29 {offsets = [0, 40], sizes = [8, 8], strides = [1, 1]} : vector<8x96xf32> to vector<8x8xf32>
    %51 = vector.extract_strided_slice %29 {offsets = [0, 72], sizes = [8, 8], strides = [1, 1]} : vector<8x96xf32> to vector<8x8xf32>
    %52 = arith.truncf %49 : vector<8x8xf32> to vector<8x8xbf16>
    %53 = arith.truncf %50 : vector<8x8xf32> to vector<8x8xbf16>
    %cst_21 = arith.constant dense<0.000000e+00> : vector<8x8xf32>
    %54 = tpu.matmul %52, %53, %cst_21 {dimension_numbers = #tpu.dot_dimension_numbers<[1], [1], [0], [0], [0, 0, 1, 0], [], []>} : vector<8x8xbf16>, vector<8x8xbf16>, vector<8x8xf32> -> vector<8x8xf32>
    %cst_22 = arith.constant dense<0xFF800000> : vector<8xf32>
    %55 = vector.multi_reduction <maximumf>, %54, %cst_22 [1] : vector<8x8xf32> to vector<8xf32>
    %56 = vector.shape_cast %55 : vector<8xf32> to vector<8x1xf32>
    %57 = vector.broadcast %56 : vector<8x1xf32> to vector<8x8xf32>
    %58 = arith.subf %54, %57 : vector<8x8xf32>
    %59 = math.exp %58 : vector<8x8xf32>
    %cst_23 = arith.constant dense<0.000000e+00> : vector<8xf32>
    %60 = vector.multi_reduction <add>, %59, %cst_23 [1] : vector<8x8xf32> to vector<8xf32>
    %61 = vector.shape_cast %60 : vector<8xf32> to vector<8x1xf32>
    %62 = vector.broadcast %61 : vector<8x1xf32> to vector<8x8xf32>
    %63 = arith.divf %59, %62 : vector<8x8xf32>
    %64 = arith.truncf %63 : vector<8x8xf32> to vector<8x8xbf16>
    %65 = arith.truncf %51 : vector<8x8xf32> to vector<8x8xbf16>
    %cst_24 = arith.constant dense<0.000000e+00> : vector<8x8xf32>
    %66 = tpu.matmul %64, %65, %cst_24 {dimension_numbers = #tpu.dot_dimension_numbers<[1], [0], [0], [1], [0, 0, 1, 1], [], []>} : vector<8x8xbf16>, vector<8x8xbf16>, vector<8x8xf32> -> vector<8x8xf32>
    %c0_25 = arith.constant 0 : index
    %c8 = arith.constant 8 : index
    %67 = vector.load %arg9[%c0_25, %c8] : memref<8x32xf32, #tpu.memory_space<vmem>>, vector<8x8xf32>
    tpu.vector_store %arg9[%c0_25, %c8], %66 {strides = array<i32>} : memref<8x32xf32, #tpu.memory_space<vmem>>, vector<8x8xf32>,
    %68 = vector.extract_strided_slice %29 {offsets = [0, 16], sizes = [8, 8], strides = [1, 1]} : vector<8x96xf32> to vector<8x8xf32>
    %69 = vector.extract_strided_slice %29 {offsets = [0, 48], sizes = [8, 8], strides = [1, 1]} : vector<8x96xf32> to vector<8x8xf32>
    %70 = vector.extract_strided_slice %29 {offsets = [0, 80], sizes = [8, 8], strides = [1, 1]} : vector<8x96xf32> to vector<8x8xf32>
    %71 = arith.truncf %68 : vector<8x8xf32> to vector<8x8xbf16>
    %72 = arith.truncf %69 : vector<8x8xf32> to vector<8x8xbf16>
    %cst_26 = arith.constant dense<0.000000e+00> : vector<8x8xf32>
    %73 = tpu.matmul %71, %72, %cst_26 {dimension_numbers = #tpu.dot_dimension_numbers<[1], [1], [0], [0], [0, 0, 1, 0], [], []>} : vector<8x8xbf16>, vector<8x8xbf16>, vector<8x8xf32> -> vector<8x8xf32>
    %cst_27 = arith.constant dense<0xFF800000> : vector<8xf32>
    %74 = vector.multi_reduction <maximumf>, %73, %cst_27 [1] : vector<8x8xf32> to vector<8xf32>
    %75 = vector.shape_cast %74 : vector<8xf32> to vector<8x1xf32>
    %76 = vector.broadcast %75 : vector<8x1xf32> to vector<8x8xf32>
    %77 = arith.subf %73, %76 : vector<8x8xf32>
    %78 = math.exp %77 : vector<8x8xf32>
    %cst_28 = arith.constant dense<0.000000e+00> : vector<8xf32>
    %79 = vector.multi_reduction <add>, %78, %cst_28 [1] : vector<8x8xf32> to vector<8xf32>
    %80 = vector.shape_cast %79 : vector<8xf32> to vector<8x1xf32>
    %81 = vector.broadcast %80 : vector<8x1xf32> to vector<8x8xf32>
    %82 = arith.divf %78, %81 : vector<8x8xf32>
    %83 = arith.truncf %82 : vector<8x8xf32> to vector<8x8xbf16>
    %84 = arith.truncf %70 : vector<8x8xf32> to vector<8x8xbf16>
    %cst_29 = arith.constant dense<0.000000e+00> : vector<8x8xf32>
    %85 = tpu.matmul %83, %84, %cst_29 {dimension_numbers = #tpu.dot_dimension_numbers<[1], [0], [0], [1], [0, 0, 1, 1], [], []>} : vector<8x8xbf16>, vector<8x8xbf16>, vector<8x8xf32> -> vector<8x8xf32>
    %c0_30 = arith.constant 0 : index
    %c16 = arith.constant 16 : index
    %86 = vector.load %arg9[%c0_30, %c16] : memref<8x32xf32, #tpu.memory_space<vmem>>, vector<8x8xf32>
    tpu.vector_store %arg9[%c0_30, %c16], %85 {strides = array<i32>} : memref<8x32xf32, #tpu.memory_space<vmem>>, vector<8x8xf32>,
    %87 = vector.extract_strided_slice %29 {offsets = [0, 24], sizes = [8, 8], strides = [1, 1]} : vector<8x96xf32> to vector<8x8xf32>
    %88 = vector.extract_strided_slice %29 {offsets = [0, 56], sizes = [8, 8], strides = [1, 1]} : vector<8x96xf32> to vector<8x8xf32>
    %89 = vector.extract_strided_slice %29 {offsets = [0, 88], sizes = [8, 8], strides = [1, 1]} : vector<8x96xf32> to vector<8x8xf32>
    %90 = arith.truncf %87 : vector<8x8xf32> to vector<8x8xbf16>
    %91 = arith.truncf %88 : vector<8x8xf32> to vector<8x8xbf16>
    %cst_31 = arith.constant dense<0.000000e+00> : vector<8x8xf32>
    %92 = tpu.matmul %90, %91, %cst_31 {dimension_numbers = #tpu.dot_dimension_numbers<[1], [1], [0], [0], [0, 0, 1, 0], [], []>} : vector<8x8xbf16>, vector<8x8xbf16>, vector<8x8xf32> -> vector<8x8xf32>
    %cst_32 = arith.constant dense<0xFF800000> : vector<8xf32>
    %93 = vector.multi_reduction <maximumf>, %92, %cst_32 [1] : vector<8x8xf32> to vector<8xf32>
    %94 = vector.shape_cast %93 : vector<8xf32> to vector<8x1xf32>
    %95 = vector.broadcast %94 : vector<8x1xf32> to vector<8x8xf32>
    %96 = arith.subf %92, %95 : vector<8x8xf32>
    %97 = math.exp %96 : vector<8x8xf32>
    %cst_33 = arith.constant dense<0.000000e+00> : vector<8xf32>
    %98 = vector.multi_reduction <add>, %97, %cst_33 [1] : vector<8x8xf32> to vector<8xf32>
    %99 = vector.shape_cast %98 : vector<8xf32> to vector<8x1xf32>
    %100 = vector.broadcast %99 : vector<8x1xf32> to vector<8x8xf32>
    %101 = arith.divf %97, %100 : vector<8x8xf32>
    %102 = arith.truncf %101 : vector<8x8xf32> to vector<8x8xbf16>
    %103 = arith.truncf %89 : vector<8x8xf32> to vector<8x8xbf16>
    %cst_34 = arith.constant dense<0.000000e+00> : vector<8x8xf32>
    %104 = tpu.matmul %102, %103, %cst_34 {dimension_numbers = #tpu.dot_dimension_numbers<[1], [0], [0], [1], [0, 0, 1, 1], [], []>} : vector<8x8xbf16>, vector<8x8xbf16>, vector<8x8xf32> -> vector<8x8xf32>
    %c0_35 = arith.constant 0 : index
    %c24 = arith.constant 24 : index
    %105 = vector.load %arg9[%c0_35, %c24] : memref<8x32xf32, #tpu.memory_space<vmem>>, vector<8x8xf32>
    tpu.vector_store %arg9[%c0_35, %c24], %104 {strides = array<i32>} : memref<8x32xf32, #tpu.memory_space<vmem>>, vector<8x8xf32>,
    %c0_36 = arith.constant 0 : index
    %c0_37 = arith.constant 0 : index
    %106 = vector.load %arg9[%c0_36, %c0_37] : memref<8x32xf32, #tpu.memory_space<vmem>>, vector<8x32xf32>
    %107 = arith.truncf %106 : vector<8x32xf32> to vector<8x32xbf16>
    %c0_38 = arith.constant 0 : index
    %c0_39 = arith.constant 0 : index
    %108 = vector.load %arg6[%c0_38, %c0_39] : memref<32x32xbf16, #tpu.memory_space<vmem>>, vector<32x32xbf16>
    %cst_40 = arith.constant dense<0.000000e+00> : vector<8x32xf32>
    %109 = tpu.matmul %107, %108, %cst_40 {dimension_numbers = #tpu.dot_dimension_numbers<[1], [0], [0], [1], [0, 0, 1, 1], [], []>} : vector<8x32xbf16>, vector<32x32xbf16>, vector<8x32xf32> -> vector<8x32xf32>
    %c0_41 = arith.constant 0 : index
    %c0_42 = arith.constant 0 : index
    %110 = vector.load %arg7[%c0_41, %c0_42] : memref<1x32xf32, #tpu.memory_space<vmem>>, vector<1x32xf32>
    %111 = vector.broadcast %110 : vector<1x32xf32> to vector<8x32xf32>
    %112 = arith.addf %109, %111 : vector<8x32xf32>
    %113 = arith.addf %1, %112 : vector<8x32xf32>
    %c0_43 = arith.constant 0 : index
    %c0_44 = arith.constant 0 : index
    %c0_45 = arith.constant 0 : index
    %114 = vector.load %arg8[%c0_43, %c0_44, %c0_45] : memref<1x8x32xf32, #tpu.memory_space<vmem>>, vector<1x8x32xf32>
    %115 = vector.shape_cast %114 : vector<1x8x32xf32> to vector<8x32xf32>
    %116 = vector.shape_cast %113 : vector<8x32xf32> to vector<1x8x32xf32>
    tpu.vector_store %arg8[%c0_43, %c0_44, %c0_45], %116 {strides = array<i32>} : memref<1x8x32xf32, #tpu.memory_space<vmem>>, vector<1x8x32xf32>,
    return
  }
  func.func @transform_0(%arg0: i32) -> (i32, i32, i32) {
    %c0_i32 = arith.constant 0 : i32
    %c0_i32_0 = arith.constant 0 : i32
    %c0_i32_1 = arith.constant 0 : i32
    return %arg0, %c0_i32, %c0_i32_0 : i32, i32, i32
  }
  func.func @transform_1(%arg0: i32) -> (i32, i32) {
    %c0_i32 = arith.constant 0 : i32
    %c0_i32_0 = arith.constant 0 : i32
    %c0_i32_1 = arith.constant 0 : i32
    return %c0_i32, %c0_i32_0 : i32, i32
  }
  func.func @transform_2(%arg0: i32) -> (i32, i32) {
    %c0_i32 = arith.constant 0 : i32
    %c0_i32_0 = arith.constant 0 : i32
    %c0_i32_1 = arith.constant 0 : i32
    return %c0_i32, %c0_i32_0 : i32, i32
  }
  func.func @transform_3(%arg0: i32) -> (i32, i32) {
    %c0_i32 = arith.constant 0 : i32
    %c0_i32_0 = arith.constant 0 : i32
    %c0_i32_1 = arith.constant 0 : i32
    return %c0_i32, %c0_i32_0 : i32, i32
  }
  func.func @transform_4(%arg0: i32) -> (i32, i32) {
    %c0_i32 = arith.constant 0 : i32
    %c0_i32_0 = arith.constant 0 : i32
    %c0_i32_1 = arith.constant 0 : i32
    return %c0_i32, %c0_i32_0 : i32, i32
  }
  func.func @transform_5(%arg0: i32) -> (i32, i32) {
    %c0_i32 = arith.constant 0 : i32
    %c0_i32_0 = arith.constant 0 : i32
    %c0_i32_1 = arith.constant 0 : i32
    return %c0_i32, %c0_i32_0 : i32, i32
  }
  func.func @transform_6(%arg0: i32) -> (i32, i32) {
    %c0_i32 = arith.constant 0 : i32
    %c0_i32_0 = arith.constant 0 : i32
    %c0_i32_1 = arith.constant 0 : i32
    return %c0_i32, %c0_i32_0 : i32, i32
  }
  func.func @transform_7(%arg0: i32) -> (i32, i32, i32) {
    %c0_i32 = arith.constant 0 : i32
    %c0_i32_0 = arith.constant 0 : i32
    %c0_i32_1 = arith.constant 0 : i32
    return %arg0, %c0_i32, %c0_i32_0 : i32, i32, i32
  }
}

</mosaic_0001>

<llo_original>
// kernel: tpu_custom_call.1
$region0: #{tpu_custom_call.1}
  #allocation0 [shape = 'u32[]', space=smem, size = 0x4, offset = 0x4, fixed_abs, tag = 'smem constant byte address 0x4 - core index']
  #allocation1 [shape = 'u32[72,128]{1,0:T(1,128)}', space=vmem, size = 0x9000, scoped, tag = 'internal scratch']
  #allocation2 [shape = 'f32[8,32]{1,0:T(8,128)}', space=vmem, size = 0x1000, scoped, tag = 'scratch operand']
  %s0 = inlined_call_operand.hbm [shape: f32[2,8,32], index: 0, kind: input, shape index: {}]
  %s1 = inlined_call_operand.hbm [shape: f32[1,32], index: 1, kind: input, shape index: {}]
  %s2 = inlined_call_operand.vmem [shape: f32[1,32], index: 2, kind: input, shape index: {}]
  %s3 = inlined_call_operand.hbm [shape: bf16[32,96], index: 3, kind: input, shape index: {}]
  %s4 = inlined_call_operand.vmem [shape: f32[1,96], index: 4, kind: input, shape index: {}]
  %s5 = inlined_call_operand.hbm [shape: bf16[32,32], index: 5, kind: input, shape index: {}]
  %s6 = inlined_call_operand.vmem [shape: f32[1,32], index: 6, kind: input, shape index: {}]
  %s7 = inlined_call_operand.hbm [shape: f32[2,8,32], index: 7, kind: output, shape index: {}]
  %s8 = sld [smem:[#allocation0]]
  $region77: #{tpu_custom_call.1} parent=0
    _
  %s10 = ssub.s32 1, %s8
  %s11 = scalar_select 0, %s10, %s8
  $region1: #{tpu_custom_call.1} parent=0
    #allocation3 [shape = 'u8[8192]{0}', space=vmem, size = 0x2000, scoped, tag = 'input window, operand 0']
    #allocation4 [shape = 's32[2]{0}', space=sflag, size = 0x8, scoped, tag = 'scoped memory for tpu_custom_call.1']
    #allocation5 [shape = 's32[2]{0}', space=sflag, size = 0x8, scoped, tag = 'scoped memory for tpu_custom_call.1']
    #allocation6 [shape = 'u8[512]{0}', space=vmem, size = 0x400, scoped, tag = 'input window, operand 1, single buffered']
    #allocation7 [shape = 's32[1]{0}', space=sflag, size = 0x4, scoped, tag = 'scoped memory for tpu_custom_call.1']
    #allocation8 [shape = 'u8[8192]{0}', space=vmem, size = 0x2000, scoped, tag = 'input window, operand 3, single buffered']
    #allocation9 [shape = 'u8[8192]{0}', space=vmem, size = 0x2000, scoped, tag = 'input window, operand 5, single buffered']
    #allocation10 [shape = 's32[1]{0}', space=sflag, size = 0x4, scoped, tag = 'scoped memory for tpu_custom_call.1']
    #allocation11 [shape = 'u8[8192]{0}', space=vmem, size = 0x2000, scoped, tag = 'output window, operand 0']
    %12 = vsyncpa [#allocation4], 0
    %s13 = scalar_lea.sflag [#allocation4], 1
    %14 = vsyncpa %s13, 0
    %15 = vsyncpa [#allocation7], 0
    %16 = vsyncpa [#allocation10], 0
    %17 = vsyncpa [#allocation5], 0
    %s18 = scalar_lea.sflag [#allocation5], 1
    %19 = vsyncpa %s18, 0
    loop: start=0, step=1, limit=4
    $region2: #{tpu_custom_call.1} parent=1 // loop_pre_header
      _
    $region3: #{tpu_custom_call.1} parent=1 // loop_header
      %s21 = sphi 0, %s25
      %p22 = scmp.ge.s32.totalorder %s21, 4
      %s31 = sphi 0, %s33
      %s34 = sphi 0, %s31
      %s35 = sphi 0, %s34
      %s51 = sphi 0, %s35
      %s55 = sphi 0, %s55
      %s57 = sphi 0, %s55
      %s58 = sphi 0, %s57
      %s72 = sphi 0, %s58
      %s76 = sphi 0, %s76
      %s78 = sphi 0, %s76
      %s79 = sphi 0, %s78
      %s93 = sphi 0, %s79
      %s97 = sphi 0, %s97
      %s99 = sphi 0, %s97
      %s100 = sphi 0, %s99
      %s114 = sphi 0, %s100
      %s118 = sphi 0, %s118
      %s120 = sphi 0, %s118
      %s121 = sphi 0, %s120
      %s135 = sphi 0, %s121
      %s139 = sphi 0, %s139
      %s141 = sphi 0, %s139
      %s142 = sphi 0, %s141
      %s156 = sphi 0, %s142
      %s160 = sphi 0, %s160
      %s162 = sphi 0, %s160
      %s163 = sphi 0, %s162
      %s177 = sphi 0, %s163
      %s183 = sphi 0, %s185
      %s186 = sphi 0, %s183
      %s187 = sphi 0, %s186
      %s203 = sphi 0, %s187
    $region4: #{tpu_custom_call.1} parent=1 // loop_header_branch
      %24 = sbr.rel (%p22) target = $region8
    $region5: #{tpu_custom_call.1} parent=1 // loop_body
      %s26 = ssub.s32 %s21, 1
      %s27 = ssub.s32 %s21, 2
      %s28 = sadd.s32 %s21, 1
      %s29 = ssub.s32 %s21, %s28
      %p30 = scmp.eq.s32.totalorder %s29, 0
      %s32 = sadd.s32 %s31, 1
      %s33 = scalar_select %p30, %s31, %s32
      %p36 = pneg %p30
      %p37 = scmp.eq.s32.totalorder %s21, 1
      %p38 = por %p36, %p37
      %p39 = scmp.ne.s32.totalorder %s31, %s34
      %p40 = scmp.eq.s32.totalorder %s21, 0
      %p41 = por %p39, %p40
      %p42 = scmp.ne.s32.totalorder %s31, %s34
      %p43 = scmp.eq.s32.totalorder %s26, 1
      %p44 = por %p42, %p43
      %p45 = scmp.ne.s32.totalorder %s34, %s35
      %p46 = scmp.eq.s32.totalorder %s26, 0
      %p47 = por %p45, %p46
      %p48 = scmp.ne.s32.totalorder %s34, %s35
      %p49 = scmp.eq.s32.totalorder %s27, 1
      %p50 = por %p48, %p49
      %p52 = scmp.ne.s32.totalorder %s35, %s51
      %p53 = scmp.eq.s32.totalorder %s27, 0
      %p54 = por %p52, %p53
      %s56 = sadd.s32 %s55, 1
      %p59 = scmp.eq.s32.totalorder %s21, 1
      %p60 = scmp.ne.s32.totalorder %s55, %s57
      %p61 = scmp.eq.s32.totalorder %s21, 0
      %p62 = por %p60, %p61
      %p63 = scmp.ne.s32.totalorder %s55, %s57
      %p64 = scmp.eq.s32.totalorder %s26, 1
      %p65 = por %p63, %p64
      %p66 = scmp.ne.s32.totalorder %s57, %s58
      %p67 = scmp.eq.s32.totalorder %s26, 0
      %p68 = por %p66, %p67
      %p69 = scmp.ne.s32.totalorder %s57, %s58
      %p70 = scmp.eq.s32.totalorder %s27, 1
      %p71 = por %p69, %p70
      %p73 = scmp.ne.s32.totalorder %s58, %s72
      %p74 = scmp.eq.s32.totalorder %s27, 0
      %p75 = por %p73, %p74
      %s77 = sadd.s32 %s76, 1
      %p80 = scmp.eq.s32.totalorder %s21, 1
      %p81 = scmp.ne.s32.totalorder %s76, %s78
      %p82 = scmp.eq.s32.totalorder %s21, 0
      %p83 = por %p81, %p82
      %p84 = scmp.ne.s32.totalorder %s76, %s78
      %p85 = scmp.eq.s32.totalorder %s26, 1
      %p86 = por %p84, %p85
      %p87 = scmp.ne.s32.totalorder %s78, %s79
      %p88 = scmp.eq.s32.totalorder %s26, 0
      %p89 = por %p87, %p88
      %p90 = scmp.ne.s32.totalorder %s78, %s79
      %p91 = scmp.eq.s32.totalorder %s27, 1
      %p92 = por %p90, %p91
      %p94 = scmp.ne.s32.totalorder %s79, %s93
      %p95 = scmp.eq.s32.totalorder %s27, 0
      %p96 = por %p94, %p95
      %s98 = sadd.s32 %s97, 1
      %p101 = scmp.eq.s32.totalorder %s21, 1
      %p102 = scmp.ne.s32.totalorder %s97, %s99
      %p103 = scmp.eq.s32.totalorder %s21, 0
      %p104 = por %p102, %p103
      %p105 = scmp.ne.s32.totalorder %s97, %s99
      %p106 = scmp.eq.s32.totalorder %s26, 1
      %p107 = por %p105, %p106
      %p108 = scmp.ne.s32.totalorder %s99, %s100
      %p109 = scmp.eq.s32.totalorder %s26, 0
      %p110 = por %p108, %p109
      %p111 = scmp.ne.s32.totalorder %s99, %s100
      %p112 = scmp.eq.s32.totalorder %s27, 1
      %p113 = por %p111, %p112
      %p115 = scmp.ne.s32.totalorder %s100, %s114
      %p116 = scmp.eq.s32.totalorder %s27, 0
      %p117 = por %p115, %p116
      %s119 = sadd.s32 %s118, 1
      %p122 = scmp.eq.s32.totalorder %s21, 1
      %p123 = scmp.ne.s32.totalorder %s118, %s120
      %p124 = scmp.eq.s32.totalorder %s21, 0
      %p125 = por %p123, %p124
      %p126 = scmp.ne.s32.totalorder %s118, %s120
      %p127 = scmp.eq.s32.totalorder %s26, 1
      %p128 = por %p126, %p127
      %p129 = scmp.ne.s32.totalorder %s120, %s121
      %p130 = scmp.eq.s32.totalorder %s26, 0
      %p131 = por %p129, %p130
      %p132 = scmp.ne.s32.totalorder %s120, %s121
      %p133 = scmp.eq.s32.totalorder %s27, 1
      %p134 = por %p132, %p133
      %p136 = scmp.ne.s32.totalorder %s121, %s135
      %p137 = scmp.eq.s32.totalorder %s27, 0
      %p138 = por %p136, %p137
      %s140 = sadd.s32 %s139, 1
      %p143 = scmp.eq.s32.totalorder %s21, 1
      %p144 = scmp.ne.s32.totalorder %s139, %s141
      %p145 = scmp.eq.s32.totalorder %s21, 0
      %p146 = por %p144, %p145
      %p147 = scmp.ne.s32.totalorder %s139, %s141
      %p148 = scmp.eq.s32.totalorder %s26, 1
      %p149 = por %p147, %p148
      %p150 = scmp.ne.s32.totalorder %s141, %s142
      %p151 = scmp.eq.s32.totalorder %s26, 0
      %p152 = por %p150, %p151
      %p153 = scmp.ne.s32.totalorder %s141, %s142
      %p154 = scmp.eq.s32.totalorder %s27, 1
      %p155 = por %p153, %p154
      %p157 = scmp.ne.s32.totalorder %s142, %s156
      %p158 = scmp.eq.s32.totalorder %s27, 0
      %p159 = por %p157, %p158
      %s161 = sadd.s32 %s160, 1
      %p164 = scmp.eq.s32.totalorder %s21, 1
      %p165 = scmp.ne.s32.totalorder %s160, %s162
      %p166 = scmp.eq.s32.totalorder %s21, 0
      %p167 = por %p165, %p166
      %p168 = scmp.ne.s32.totalorder %s160, %s162
      %p169 = scmp.eq.s32.totalorder %s26, 1
      %p170 = por %p168, %p169
      %p171 = scmp.ne.s32.totalorder %s162, %s163
      %p172 = scmp.eq.s32.totalorder %s26, 0
      %p173 = por %p171, %p172
      %p174 = scmp.ne.s32.totalorder %s162, %s163
      %p175 = scmp.eq.s32.totalorder %s27, 1
      %p176 = por %p174, %p175
      %p178 = scmp.ne.s32.totalorder %s163, %s177
      %p179 = scmp.eq.s32.totalorder %s27, 0
      %p180 = por %p178, %p179
      %s181 = ssub.s32 %s21, %s28
      %p182 = scmp.eq.s32.totalorder %s181, 0
      %s184 = sadd.s32 %s183, 1
      %s185 = scalar_select %p182, %s183, %s184
      %p188 = pneg %p182
      %p189 = scmp.eq.s32.totalorder %s21, 1
      %p190 = por %p188, %p189
      %p191 = scmp.ne.s32.totalorder %s183, %s186
      %p192 = scmp.eq.s32.totalorder %s21, 0
      %p193 = por %p191, %p192
      %p194 = scmp.ne.s32.totalorder %s183, %s186
      %p195 = scmp.eq.s32.totalorder %s26, 1
      %p196 = por %p194, %p195
      %p197 = scmp.ne.s32.totalorder %s186, %s187
      %p198 = scmp.eq.s32.totalorder %s26, 0
      %p199 = por %p197, %p198
      %p200 = scmp.ne.s32.totalorder %s186, %s187
      %p201 = scmp.eq.s32.totalorder %s27, 1
      %p202 = por %p200, %p201
      %p204 = scmp.ne.s32.totalorder %s187, %s203
      %p205 = scmp.eq.s32.totalorder %s27, 0
      %p206 = por %p204, %p205
      %p207 = scmp.le.s32.totalorder 1, %s21
      %p208 = scmp.lt.s32.totalorder %s21, 3
      %p209 = pnand %p207, %p208
      %p210 = pneg %p209
      // Predicated region
      $region9: #{tpu_custom_call.1} parent=5 // pred_check
        _
      $region10: #{tpu_custom_call.1} parent=5 // pred_check_branch
        %212 = sbr.rel (%p209) target = $region12
      $region11: #{tpu_custom_call.1} parent=5 // pred_region
        %s213 = ssub.s32 %s21, 1
        // Predicated region
        $region13: #{tpu_custom_call.1} parent=11 // pred_check
          %p214 = pneg %p68
        $region14: #{tpu_custom_call.1} parent=11 // pred_check_branch
          %216 = sbr.rel (%p214) target = $region16
        $region15: #{tpu_custom_call.1} parent=11 // pred_region
          %218 = vsyncadd [#allocation7], 0
          %s220 = sshll.u32 %s1, 4
          %s221 = int_to_ptr.hbm [resolvable:$true] %s220
          %s222 = sshll.u32 [#allocation6], 4
          %s223 = int_to_ptr.vmem [resolvable:$true] %s222
          %225 = dma.hbm_to_vmem [thread:$0]  %s221, 16, %s223, [#allocation7]
        $region16: #{tpu_custom_call.1} parent=11 // pred_fallthru
          _
        // Predicated region
        $region17: #{tpu_custom_call.1} parent=11 // pred_check
          %p226 = pneg %p89
        $region18: #{tpu_custom_call.1} parent=11 // pred_check_branch
          %228 = sbr.rel (%p226) target = $region20
        $region19: #{tpu_custom_call.1} parent=11 // pred_region
          _
        $region20: #{tpu_custom_call.1} parent=11 // pred_fallthru
          _
        // Predicated region
        $region21: #{tpu_custom_call.1} parent=11 // pred_check
          %p229 = pneg %p110
        $region22: #{tpu_custom_call.1} parent=11 // pred_check_branch
          %231 = sbr.rel (%p229) target = $region24
        $region23: #{tpu_custom_call.1} parent=11 // pred_region
          %233 = vsyncadd [#allocation7], 0
          %s234 = sshll.u32 %s3, 4
          %s235 = int_to_ptr.hbm [resolvable:$true] %s234
          %s236 = sshll.u32 [#allocation8], 4
          %s237 = int_to_ptr.vmem [resolvable:$true] %s236
          %242 = dma.hbm_to_vmem [thread:$0]  %s235, 256, %s237, [#allocation7], 64, 64, 4
        $region24: #{tpu_custom_call.1} parent=11 // pred_fallthru
          _
        // Predicated region
        $region25: #{tpu_custom_call.1} parent=11 // pred_check
          %p243 = pneg %p131
        $region26: #{tpu_custom_call.1} parent=11 // pred_check_branch
          %245 = sbr.rel (%p243) target = $region28
        $region27: #{tpu_custom_call.1} parent=11 // pred_region
          _
        $region28: #{tpu_custom_call.1} parent=11 // pred_fallthru
          _
        // Predicated region
        $region29: #{tpu_custom_call.1} parent=11 // pred_check
          %p246 = pneg %p152
        $region30: #{tpu_custom_call.1} parent=11 // pred_check_branch
          %248 = sbr.rel (%p246) target = $region32
        $region31: #{tpu_custom_call.1} parent=11 // pred_region
          %250 = vsyncadd [#allocation10], 0
          %s251 = sshll.u32 %s5, 4
          %s252 = int_to_ptr.hbm [resolvable:$true] %s251
          %s253 = sshll.u32 [#allocation9], 4
          %s254 = int_to_ptr.vmem [resolvable:$true] %s253
          %259 = dma.hbm_to_vmem [thread:$0]  %s252, 256, %s254, [#allocation10], 64, 64, 4
        $region32: #{tpu_custom_call.1} parent=11 // pred_fallthru
          _
        // Predicated region
        $region33: #{tpu_custom_call.1} parent=11 // pred_check
          %p260 = pneg %p173
        $region34: #{tpu_custom_call.1} parent=11 // pred_check_branch
          %262 = sbr.rel (%p260) target = $region36
        $region35: #{tpu_custom_call.1} parent=11 // pred_region
          _
        $region36: #{tpu_custom_call.1} parent=11 // pred_fallthru
          _
      $region12: #{tpu_custom_call.1} parent=5 // pred_fallthru
        _
      %p263 = scmp.lt.s32.totalorder %s21, 2
      // Predicated region
      $region37: #{tpu_custom_call.1} parent=5 // pred_check
        %p264 = pneg %p263
      $region38: #{tpu_custom_call.1} parent=5 // pred_check_branch
        %266 = sbr.rel (%p264) target = $region40
      $region39: #{tpu_custom_call.1} parent=5 // pred_region
        // Predicated region
        $region41: #{tpu_custom_call.1} parent=39 // pred_check
          %p267 = pneg %p41
        $region42: #{tpu_custom_call.1} parent=39 // pred_check_branch
          %269 = sbr.rel (%p267) target = $region44
        $region43: #{tpu_custom_call.1} parent=39 // pred_region
          %s270 = sand.u32 %s31, 1
          %s271 = scalar_lea.sflag [#allocation4], %s270
          %s272 = sand.u32 %s31, 1
          %s273 = smul.addr %s272, 8
          %s274 = scalar_lea.vmem [#allocation3], %s273
          %276 = vsyncadd %s271, 0
          %s277 = smul.addr %s21, 8
          %s278 = scalar_lea.hbm %s0, %s277
          %s280 = sshll.u32 %s278, 4
          %s281 = int_to_ptr.hbm [resolvable:$true] %s280
          %s282 = sshll.u32 %s274, 4
          %s283 = int_to_ptr.vmem [resolvable:$true] %s282
          %285 = dma.hbm_to_vmem [thread:$0]  %s281, 128, %s283, %s271
        $region44: #{tpu_custom_call.1} parent=39 // pred_fallthru
          _
      $region40: #{tpu_custom_call.1} parent=5 // pred_fallthru
        _
      %p286 = scmp.le.s32.totalorder 1, %s21
      %p287 = scmp.lt.s32.totalorder %s21, 3
      %p288 = pnand %p286, %p287
      %p289 = pneg %p288
      // Predicated region
      $region45: #{tpu_custom_call.1} parent=5 // pred_check
        _
      $region46: #{tpu_custom_call.1} parent=5 // pred_check_branch
        %291 = sbr.rel (%p288) target = $region48
      $region47: #{tpu_custom_call.1} parent=5 // pred_region
        %s292 = ssub.s32 %s21, 1
        %s293 = sand.u32 %s34, 1
        %s294 = scalar_lea.sflag [#allocation4], %s293
        %s295 = sand.u32 %s34, 1
        %s296 = smul.addr %s295, 8
        %s297 = scalar_lea.vmem [#allocation3], %s296
        // Predicated region
        $region49: #{tpu_custom_call.1} parent=47 // pred_check
          %p298 = pneg %p47
        $region50: #{tpu_custom_call.1} parent=47 // pred_check_branch
          %300 = sbr.rel (%p298) target = $region52
        $region51: #{tpu_custom_call.1} parent=47 // pred_region
          %302 = dma.done %s294, 128
        $region52: #{tpu_custom_call.1} parent=47 // pred_fallthru
          _
        // Predicated region
        $region53: #{tpu_custom_call.1} parent=47 // pred_check
          %p303 = pneg %p68
        $region54: #{tpu_custom_call.1} parent=47 // pred_check_branch
          %305 = sbr.rel (%p303) target = $region56
        $region55: #{tpu_custom_call.1} parent=47 // pred_region
          %307 = dma.done [#allocation7], 16
        $region56: #{tpu_custom_call.1} parent=47 // pred_fallthru
          _
        // Predicated region
        $region57: #{tpu_custom_call.1} parent=47 // pred_check
          %p308 = pneg %p110
        $region58: #{tpu_custom_call.1} parent=47 // pred_check_branch
          %310 = sbr.rel (%p308) target = $region60
        $region59: #{tpu_custom_call.1} parent=47 // pred_region
          %312 = dma.done [#allocation7], 256
        $region60: #{tpu_custom_call.1} parent=47 // pred_fallthru
          _
        // Predicated region
        $region61: #{tpu_custom_call.1} parent=47 // pred_check
          %p313 = pneg %p152
        $region62: #{tpu_custom_call.1} parent=47 // pred_check_branch
          %315 = sbr.rel (%p313) target = $region64
        $region63: #{tpu_custom_call.1} parent=47 // pred_region
          %317 = dma.done [#allocation10], 256
        $region64: #{tpu_custom_call.1} parent=47 // pred_fallthru
          _
        %s318 = sand.u32 %s34, 1
        %s319 = scalar_lea.sflag [#allocation4], %s318
        %s320 = sand.u32 %s34, 1
        %s321 = smul.addr %s320, 8
        %s322 = scalar_lea.vmem [#allocation3], %s321
        %p323 = pneg %p47
        %p324 = pneg %p44
        %p325 = pneg %p68
        %p326 = pneg %p65
        %p327 = pneg %p89
        %p328 = pneg %p86
        %p329 = pneg %p110
        %p330 = pneg %p107
        %p331 = pneg %p131
        %p332 = pneg %p128
        %p333 = pneg %p152
        %p334 = pneg %p149
        %p335 = pneg %p173
        %p336 = pneg %p170
        %p337 = pneg %p199
        %p338 = pneg %p196
        %s339 = sand.u32 %s186, 1
        %s340 = scalar_lea.sflag [#allocation5], %s339
        %s341 = sand.u32 %s186, 1
        %s342 = smul.addr %s341, 8
        %s343 = scalar_lea.vmem [#allocation11], %s342
        %v345 = vld [vmem:[%s297] sm:$0xff]
        %v346 = vld [vmem:[#allocation6] sm:$0x1]
        %v347 = vld [vmem:[%s2] sm:$0x1]
        %vm348 = vcmask 261120
        %v349 = vsel %vm348, %v345, 0.0
        %350 = vadd.xlane.f32.xlu0 %v349
        %v351 = vpop.xlane.xlu0 %350
        %v352 = vrcp.pop 32.0
        %v353 = vmul.f32 32.0, %v352
        %v354 = vsub.f32 1.0, %v353
        %v355 = vmul.f32 %v352, %v354
        %v356 = vadd.f32 %v352, %v355
        %vm357 = vweird.f32 %v352
        %v358 = vsel %vm357, %v352, %v356
        %v359 = vmul.f32 %v351, %v358
        %v360 = vsub.f32 %v345, %v359
        %v361 = vmul.f32 %v360, %v360
        %v362 = vsel %vm348, %v361, 0.0
        %363 = vadd.xlane.f32.xlu0 %v362
        %v364 = vpop.xlane.xlu0 %363
        %v365 = vmul.f32 %v364, %v358
        %v366 = vadd.f32 %v365, 1e-05
        %v367 = vrsqrt.pop %v366
        %v368 = vmul.f32 %v367, %v366
        %v369 = vmul.f32 %v368, %v367
        %v370 = vmul.f32 0.5, %v369
        %v371 = vsub.f32 1.5, %v370
        %v372 = vmul.f32 %v367, %v371
        %vm373 = vweird.f32 %v366
        %vm374 = vweird.f32 %v367
        %vm375 = vmor %vm373, %vm374
        %v376 = vsel %vm375, %v367, %v372
        %v377 = vmul.f32 %v360, %v376
        %v379 = vperm.slane %v346, 0
        %v381 = vmul.f32 %v377, %v379
        %v383 = vperm.slane %v347, 0
        %v385 = vadd.f32 %v381, %v383
        %v386 = vpack.c.bf16 %v385, %v385
        %v387 = vld [vmem:[#allocation8] sm:$0xf]
        %v388 = vld [vmem:[#allocation8 + $0x4] sm:$0xf]
        %v389 = vld [vmem:[#allocation8 + $0x8] sm:$0xf]
        %v390 = vld [vmem:[#allocation8 + $0xc] sm:$0xf]
        %v391 = vld [vmem:[%s4] sm:$0x1]
        %v393 = vperm.slane %v391, 0
        %v399 = vunpack.c.l.b16 %v387
        %v400 = vunpack.c.l.b16 %v388
        %v401 = vunpack.c.l.b16 %v389
        %v402 = vunpack.c.l.b16 %v390
        %v403 = vpack.c.b16 %v400, %v399
        %v404 = vpack.c.b16 %v402, %v401
        %v408 = vsel %vm348, %v386, 0
        %410 = vmatpush.bf16.msra.mxu0 0
        %411 = vmatpush.bf16.msra.mxu0 0
        %412 = vmatpush.bf16.msra.mxu0 0
        %413 = vmatpush.bf16.msra.mxu0 0
        %414 = vmatpush.bf16.msra.mxu0 0
        %415 = vmatpush.bf16.msra.mxu0 0
        %416 = vmatpush.bf16.msra.mxu0 %v404
        %417 = vmatpush.bf16.msra.mxu0 %v403
        %418 = vmatmul.bf16.gmra.mxu0 %v408
        %v419 = vpop.f32.mrf.mxu0
        %v420 = vadd.f32 %v393, %v419
        %v421 = vpop.f32.mrf.mxu0
        %422 = vdwg.mxu0
        %v423 = vpack.c.bf16 %v420, %v420
        %425 = vrot.lane.b32.xlu0 %v423, 96
        %v426 = vpop.permute.xlu0 %425
        %vm427 = vcmask 64512
        %v429 = vsel %vm427, %v423, 0
        %v432 = vsel %vm427, %v426, 0
        %434 = vmatpush.bf16.xpose.msra.mxu0 0
        %435 = vmatpush.bf16.xpose.msra.mxu0 0
        %436 = vmatpush.bf16.xpose.msra.mxu0 0
        %437 = vmatpush.bf16.xpose.msra.mxu0 0
        %438 = vmatpush.bf16.xpose.msra.mxu0 0
        %439 = vmatpush.bf16.xpose.msra.mxu0 0
        %440 = vmatpush.bf16.xpose.msra.mxu0 0
        %441 = vmatpush.bf16.xpose.msra.mxu0 %v432
        %442 = vmatmul.bf16.gmra.mxu0 %v429
        %v443 = vpop.f32.mrf.mxu0
        %v444 = vadd.f32 0.0, %v443
        %v445 = vpop.f32.mrf.mxu0
        %446 = vdwg.mxu0
        %v447 = vsel %vm427, %v444, -inf
        %448 = vmax.xlane.f32.xlu0 %v447
        %v449 = vpop.xlane.xlu0 %448
        %v450 = vsub.f32 %v444, %v449
        %v451 = vmul.f32 %v450, 1.442695
        %v452 = vpow.pop %v451
        %v453 = vsel %vm427, %v452, 0.0
        %454 = vadd.xlane.f32.xlu0 %v453
        %v455 = vpop.xlane.xlu0 %454
        %v456 = vrcp.pop %v455
        %v457 = vmul.f32 %v455, %v456
        %v458 = vsub.f32 1.0, %v457
        %v459 = vmul.f32 %v456, %v458
        %v460 = vadd.f32 %v456, %v459
        %vm461 = vweird.f32 %v455
        %vm462 = vweird.f32 %v456
        %vm463 = vmor %vm461, %vm462
        %v464 = vsel %vm463, %v456, %v460
        %v465 = vand.u32 2147483647, %v455
        %vm466 = vcmp.eq.f32.partialorder %v465, 8.507059e+37
        %v467 = vand.u32 %v455, 2147483648
        %v468 = vor.u32 1.1754944e-38, %v467
        %v469 = vsel %vm466, %v468, %v464
        %v470 = vmul.f32 %v452, %v469
        %v471 = vpack.c.bf16 %v470, %v470
        %472 = vrot.lane.b32.xlu0 %v423, 64
        %v473 = vpop.permute.xlu0 %472
        %v475 = vsel %vm427, %v471, 0
        %vm477 = vcmask 1043456
        %v479 = vsel %vm477, %v473, 0
        %481 = vmatpush.bf16.msra.mxu0 0
        %482 = vmatpush.bf16.msra.mxu0 0
        %483 = vmatpush.bf16.msra.mxu0 0
        %484 = vmatpush.bf16.msra.mxu0 0
        %485 = vmatpush.bf16.msra.mxu0 0
        %486 = vmatpush.bf16.msra.mxu0 0
        %487 = vmatpush.bf16.msra.mxu0 0
        %488 = vmatpush.bf16.msra.mxu0 %v479
        %489 = vmatmul.bf16.gmra.mxu0 %v475
        %v490 = vpop.f32.mrf.mxu0
        %v491 = vadd.f32 0.0, %v490
        %v492 = vpop.f32.mrf.mxu0
        %493 = vdwg.mxu0
        %494 = vst.msk [vmem:[#allocation2] sm:$0xff] %vm427, %v491
        %495 = vrot.lane.b32.xlu0 %v423, 120
        %v496 = vpop.permute.xlu0 %495
        %497 = vrot.lane.b32.xlu0 %v423, 88
        %v498 = vpop.permute.xlu0 %497
        %v500 = vsel %vm427, %v496, 0
        %v503 = vsel %vm427, %v498, 0
        %505 = vmatpush.bf16.xpose.msra.mxu0 0
        %506 = vmatpush.bf16.xpose.msra.mxu0 0
        %507 = vmatpush.bf16.xpose.msra.mxu0 0
        %508 = vmatpush.bf16.xpose.msra.mxu0 0
        %509 = vmatpush.bf16.xpose.msra.mxu0 0
        %510 = vmatpush.bf16.xpose.msra.mxu0 0
        %511 = vmatpush.bf16.xpose.msra.mxu0 0
        %512 = vmatpush.bf16.xpose.msra.mxu0 %v503
        %513 = vmatmul.bf16.gmra.mxu0 %v500
        %v514 = vpop.f32.mrf.mxu0
        %v515 = vadd.f32 0.0, %v514
        %v516 = vpop.f32.mrf.mxu0
        %517 = vdwg.mxu0
        %v518 = vsel %vm427, %v515, -inf
        %519 = vmax.xlane.f32.xlu0 %v518
        %v520 = vpop.xlane.xlu0 %519
        %v521 = vsub.f32 %v515, %v520
        %v522 = vmul.f32 %v521, 1.442695
        %v523 = vpow.pop %v522
        %v524 = vsel %vm427, %v523, 0.0
        %525 = vadd.xlane.f32.xlu0 %v524
        %v526 = vpop.xlane.xlu0 %525
        %v527 = vrcp.pop %v526
        %v528 = vmul.f32 %v526, %v527
        %v529 = vsub.f32 1.0, %v528
        %v530 = vmul.f32 %v527, %v529
        %v531 = vadd.f32 %v527, %v530
        %vm532 = vweird.f32 %v526
        %vm533 = vweird.f32 %v527
        %vm534 = vmor %vm532, %vm533
        %v535 = vsel %vm534, %v527, %v531
        %v536 = vand.u32 2147483647, %v526
        %vm537 = vcmp.eq.f32.partialorder %v536, 8.507059e+37
        %v538 = vand.u32 %v526, 2147483648
        %v539 = vor.u32 1.1754944e-38, %v538
        %v540 = vsel %vm537, %v539, %v535
        %v541 = vmul.f32 %v523, %v540
        %v542 = vpack.c.bf16 %v541, %v541
        %543 = vrot.lane.b32.xlu0 %v423, 56
        %v544 = vpop.permute.xlu0 %543
        %v546 = vsel %vm427, %v542, 0
        %v549 = vsel %vm477, %v544, 0
        %551 = vmatpush.bf16.msra.mxu0 0
        %552 = vmatpush.bf16.msra.mxu0 0
        %553 = vmatpush.bf16.msra.mxu0 0
        %554 = vmatpush.bf16.msra.mxu0 0
        %555 = vmatpush.bf16.msra.mxu0 0
        %556 = vmatpush.bf16.msra.mxu0 0
        %557 = vmatpush.bf16.msra.mxu0 0
        %558 = vmatpush.bf16.msra.mxu0 %v549
        %559 = vmatmul.bf16.gmra.mxu0 %v546
        %v560 = vpop.f32.mrf.mxu0
        %v561 = vadd.f32 0.0, %v560
        %v562 = vpop.f32.mrf.mxu0
        %563 = vdwg.mxu0
        %565 = vrot.lane.b32.xlu0 %v561, 8
        %v566 = vpop.permute.xlu0 %565
        %vm568 = vcmask 130112
        %569 = vst.msk [vmem:[#allocation2] sm:$0xff] %vm568, %v566
        %570 = vrot.lane.b32.xlu0 %v423, 112
        %v571 = vpop.permute.xlu0 %570
        %572 = vrot.lane.b32.xlu0 %v423, 80
        %v573 = vpop.permute.xlu0 %572
        %v575 = vsel %vm427, %v571, 0
        %v578 = vsel %vm427, %v573, 0
        %580 = vmatpush.bf16.xpose.msra.mxu0 0
        %581 = vmatpush.bf16.xpose.msra.mxu0 0
        %582 = vmatpush.bf16.xpose.msra.mxu0 0
        %583 = vmatpush.bf16.xpose.msra.mxu0 0
        %584 = vmatpush.bf16.xpose.msra.mxu0 0
        %585 = vmatpush.bf16.xpose.msra.mxu0 0
        %586 = vmatpush.bf16.xpose.msra.mxu0 0
        %587 = vmatpush.bf16.xpose.msra.mxu0 %v578
        %588 = vmatmul.bf16.gmra.mxu0 %v575
        %v589 = vpop.f32.mrf.mxu0
        %v590 = vadd.f32 0.0, %v589
        %v591 = vpop.f32.mrf.mxu0
        %592 = vdwg.mxu0
        %v593 = vsel %vm427, %v590, -inf
        %594 = vmax.xlane.f32.xlu0 %v593
        %v595 = vpop.xlane.xlu0 %594
        %v596 = vsub.f32 %v590, %v595
        %v597 = vmul.f32 %v596, 1.442695
        %v598 = vpow.pop %v597
        %v599 = vsel %vm427, %v598, 0.0
        %600 = vadd.xlane.f32.xlu0 %v599
        %v601 = vpop.xlane.xlu0 %600
        %v602 = vrcp.pop %v601
        %v603 = vmul.f32 %v601, %v602
        %v604 = vsub.f32 1.0, %v603
        %v605 = vmul.f32 %v602, %v604
        %v606 = vadd.f32 %v602, %v605
        %vm607 = vweird.f32 %v601
        %vm608 = vweird.f32 %v602
        %vm609 = vmor %vm607, %vm608
        %v610 = vsel %vm609, %v602, %v606
        %v611 = vand.u32 2147483647, %v601
        %vm612 = vcmp.eq.f32.partialorder %v611, 8.507059e+37
        %v613 = vand.u32 %v601, 2147483648
        %v614 = vor.u32 1.1754944e-38, %v613
        %v615 = vsel %vm612, %v614, %v610
        %v616 = vmul.f32 %v598, %v615
        %v617 = vpack.c.bf16 %v616, %v616
        %618 = vrot.lane.b32.xlu0 %v423, 48
        %v619 = vpop.permute.xlu0 %618
        %v621 = vsel %vm427, %v617, 0
        %v624 = vsel %vm477, %v619, 0
        %626 = vmatpush.bf16.msra.mxu0 0
        %627 = vmatpush.bf16.msra.mxu0 0
        %628 = vmatpush.bf16.msra.mxu0 0
        %629 = vmatpush.bf16.msra.mxu0 0
        %630 = vmatpush.bf16.msra.mxu0 0
        %631 = vmatpush.bf16.msra.mxu0 0
        %632 = vmatpush.bf16.msra.mxu0 0
        %633 = vmatpush.bf16.msra.mxu0 %v624
        %634 = vmatmul.bf16.gmra.mxu0 %v621
        %v635 = vpop.f32.mrf.mxu0
        %v636 = vadd.f32 0.0, %v635
        %v637 = vpop.f32.mrf.mxu0
        %638 = vdwg.mxu0
        %640 = vrot.lane.b32.xlu0 %v636, 16
        %v641 = vpop.permute.xlu0 %640
        %vm643 = vcmask 195712
        %644 = vst.msk [vmem:[#allocation2] sm:$0xff] %vm643, %v641
        %645 = vrot.lane.b32.xlu0 %v423, 104
        %v646 = vpop.permute.xlu0 %645
        %647 = vrot.lane.b32.xlu0 %v423, 72
        %v648 = vpop.permute.xlu0 %647
        %v650 = vsel %vm427, %v646, 0
        %v653 = vsel %vm427, %v648, 0
        %655 = vmatpush.bf16.xpose.msra.mxu0 0
        %656 = vmatpush.bf16.xpose.msra.mxu0 0
        %657 = vmatpush.bf16.xpose.msra.mxu0 0
        %658 = vmatpush.bf16.xpose.msra.mxu0 0
        %659 = vmatpush.bf16.xpose.msra.mxu0 0
        %660 = vmatpush.bf16.xpose.msra.mxu0 0
        %661 = vmatpush.bf16.xpose.msra.mxu0 0
        %662 = vmatpush.bf16.xpose.msra.mxu0 %v653
        %663 = vmatmul.bf16.gmra.mxu0 %v650
        %v664 = vpop.f32.mrf.mxu0
        %v665 = vadd.f32 0.0, %v664
        %v666 = vpop.f32.mrf.mxu0
        %667 = vdwg.mxu0
        %v668 = vsel %vm427, %v665, -inf
        %669 = vmax.xlane.f32.xlu0 %v668
        %v670 = vpop.xlane.xlu0 %669
        %v671 = vsub.f32 %v665, %v670
        %v672 = vmul.f32 %v671, 1.442695
        %v673 = vpow.pop %v672
        %v674 = vsel %vm427, %v673, 0.0
        %675 = vadd.xlane.f32.xlu0 %v674
        %v676 = vpop.xlane.xlu0 %675
        %v677 = vrcp.pop %v676
        %v678 = vmul.f32 %v676, %v677
        %v679 = vsub.f32 1.0, %v678
        %v680 = vmul.f32 %v677, %v679
        %v681 = vadd.f32 %v677, %v680
        %vm682 = vweird.f32 %v676
        %vm683 = vweird.f32 %v677
        %vm684 = vmor %vm682, %vm683
        %v685 = vsel %vm684, %v677, %v681
        %v686 = vand.u32 2147483647, %v676
        %vm687 = vcmp.eq.f32.partialorder %v686, 8.507059e+37
        %v688 = vand.u32 %v676, 2147483648
        %v689 = vor.u32 1.1754944e-38, %v688
        %v690 = vsel %vm687, %v689, %v685
        %v691 = vmul.f32 %v673, %v690
        %v692 = vpack.c.bf16 %v691, %v691
        %693 = vrot.lane.b32.xlu0 %v423, 40
        %v694 = vpop.permute.xlu0 %693
        %v696 = vsel %vm427, %v692, 0
        %v699 = vsel %vm477, %v694, 0
        %701 = vmatpush.bf16.msra.mxu0 0
        %702 = vmatpush.bf16.msra.mxu0 0
        %703 = vmatpush.bf16.msra.mxu0 0
        %704 = vmatpush.bf16.msra.mxu0 0
        %705 = vmatpush.bf16.msra.mxu0 0
        %706 = vmatpush.bf16.msra.mxu0 0
        %707 = vmatpush.bf16.msra.mxu0 0
        %708 = vmatpush.bf16.msra.mxu0 %v699
        %709 = vmatmul.bf16.gmra.mxu0 %v696
        %v710 = vpop.f32.mrf.mxu0
        %v711 = vadd.f32 0.0, %v710
        %v712 = vpop.f32.mrf.mxu0
        %713 = vdwg.mxu0
        %715 = vrot.lane.b32.xlu0 %v711, 24
        %v716 = vpop.permute.xlu0 %715
        %vm718 = vcmask 261312
        %719 = vst.msk [vmem:[#allocation2] sm:$0xff] %vm718, %v716
        %v720 = vld [vmem:[#allocation2] sm:$0xff]
        %v721 = vpack.c.bf16 %v720, %v720
        %v722 = vld [vmem:[#allocation9] sm:$0xf]
        %v723 = vld [vmem:[#allocation9 + $0x4] sm:$0xf]
        %v724 = vld [vmem:[#allocation9 + $0x8] sm:$0xf]
        %v725 = vld [vmem:[#allocation9 + $0xc] sm:$0xf]
        %v726 = vld [vmem:[%s6] sm:$0x1]
        %v728 = vperm.slane %v726, 0
        %v734 = vunpack.c.l.b16 %v722
        %v735 = vunpack.c.l.b16 %v723
        %v736 = vunpack.c.l.b16 %v724
        %v737 = vunpack.c.l.b16 %v725
        %v738 = vpack.c.b16 %v735, %v734
        %v739 = vpack.c.b16 %v737, %v736
        %v743 = vsel %vm348, %v721, 0
        %745 = vmatpush.bf16.msra.mxu0 0
        %746 = vmatpush.bf16.msra.mxu0 0
        %747 = vmatpush.bf16.msra.mxu0 0
        %748 = vmatpush.bf16.msra.mxu0 0
        %749 = vmatpush.bf16.msra.mxu0 0
        %750 = vmatpush.bf16.msra.mxu0 0
        %751 = vmatpush.bf16.msra.mxu0 %v739
        %752 = vmatpush.bf16.msra.mxu0 %v738
        %753 = vmatmul.bf16.gmra.mxu0 %v743
        %v754 = vpop.f32.mrf.mxu0
        %v755 = vadd.f32 %v728, %v754
        %v756 = vpop.f32.mrf.mxu0
        %757 = vdwg.mxu0
        %v758 = vadd.f32 %v345, %v755
        %759 = vst.msk [vmem:[%s343] sm:$0xff] %vm348, %v758
        %s760 = sand.u32 %s186, 1
        %s761 = scalar_lea.sflag [#allocation5], %s760
        %s762 = sand.u32 %s186, 1
        %s763 = smul.addr %s762, 8
        %s764 = scalar_lea.vmem [#allocation11], %s763
        // Predicated region
        $region65: #{tpu_custom_call.1} parent=47 // pred_check
          %p765 = pneg %p196
        $region66: #{tpu_custom_call.1} parent=47 // pred_check_branch
          %767 = sbr.rel (%p765) target = $region68
        $region67: #{tpu_custom_call.1} parent=47 // pred_region
          %769 = vsyncadd %s761, 0
          %s770 = smul.addr %s26, 8
          %s771 = scalar_lea.hbm %s7, %s770
          %s773 = sshll.u32 %s764, 4
          %s774 = int_to_ptr.vmem [resolvable:$true] %s773
          %s775 = sshll.u32 %s771, 4
          %s776 = int_to_ptr.hbm [resolvable:$true] %s775
          %778 = dma.vmem_to_hbm [thread:$0]  %s774, 128, %s776, %s761
        $region68: #{tpu_custom_call.1} parent=47 // pred_fallthru
          _
      $region48: #{tpu_custom_call.1} parent=5 // pred_fallthru
        _
      %p779 = scmp.le.s32.totalorder 2, %s21
      // Predicated region
      $region69: #{tpu_custom_call.1} parent=5 // pred_check
        %p780 = pneg %p779
      $region70: #{tpu_custom_call.1} parent=5 // pred_check_branch
        %782 = sbr.rel (%p780) target = $region72
      $region71: #{tpu_custom_call.1} parent=5 // pred_region
        %s783 = ssub.s32 %s21, 2
        // Predicated region
        $region73: #{tpu_custom_call.1} parent=71 // pred_check
          %p784 = pneg %p202
        $region74: #{tpu_custom_call.1} parent=71 // pred_check_branch
          %786 = sbr.rel (%p784) target = $region76
        $region75: #{tpu_custom_call.1} parent=71 // pred_region
          %s787 = sand.u32 %s187, 1
          %s788 = scalar_lea.sflag [#allocation5], %s787
          %s789 = sand.u32 %s187, 1
          %s790 = smul.addr %s789, 8
          %s791 = scalar_lea.vmem [#allocation11], %s790
          %793 = dma.done %s788, 128
        $region76: #{tpu_custom_call.1} parent=71 // pred_fallthru
          _
      $region72: #{tpu_custom_call.1} parent=5 // pred_fallthru
        _
    $region6: #{tpu_custom_call.1} parent=1 // loop_footer
      %s25 = sadd.s32 1, %s21
    $region7: #{tpu_custom_call.1} parent=1 // loop_footer_branch
      %20 = sbr.rel target = $region3
    $region8: #{tpu_custom_call.1} parent=1 // loop_exit
      _
    %794 = vsyncpa [#allocation4], 1
    %s795 = scalar_lea.sflag [#allocation4], 1
    %796 = vsyncpa %s795, 1
    %797 = vsyncpa [#allocation7], 1
    %798 = vsyncpa [#allocation10], 1
    %799 = vsyncpa [#allocation5], 1
    %s800 = scalar_lea.sflag [#allocation5], 1
    %801 = vsyncpa %s800, 1

</llo_original>
